<compile_context>
chip_gen: v6e
topology: v6e:2x2x1
jax: 0.10.0
libtpu: 0.0.40
codegen_flags: <defaults>
</compile_context>

<pallas_src>
import functools

import jax
import jax.numpy as jnp
from jax.experimental import pallas as pl
from jax.experimental.pallas import tpu as pltpu


def _round_up(x, m):
    return ((x + m - 1) // m) * m


def _cdiv(a, b):
    return -(-a // b)


@functools.lru_cache(maxsize=1)
def _tpu_info():
    """Returns (vmem_limit_bytes, vmem_budget_bytes, num_tensorcores)."""
    vmem_cap = 64 * 1024 * 1024  # conservative fallback (v7x per-TC VMEM)
    num_tc = 1
    try:
        info = pltpu.get_tpu_info()
        vmem_cap = int(getattr(info, "vmem_capacity_bytes", vmem_cap))
    except Exception:
        pass
    try:
        kind = jax.devices()[0].device_kind.lower()
        # Megacore chips (2 TensorCores behind one device).
        if any(tag in kind for tag in ("v7", "v4", "v5p")):
            num_tc = 2
    except Exception:
        pass
    # ~48 MiB on 64 MiB/TC chips (v7x), ~96 MiB on 128 MiB chips (v5e/v6e).
    limit = min((vmem_cap * 3) // 4, 100 * 1024 * 1024)
    budget = max(limit - 8 * 1024 * 1024, 8 * 1024 * 1024)
    return limit, budget, num_tc


def _mm_kernel_accumulate_out(x_ref, w_ref, o_ref):
    """f32 output: accumulate straight into the VMEM-resident output block."""

    @pl.when(pl.program_id(2) == 0)
    def _init():
        o_ref[...] = jnp.zeros_like(o_ref)

    o_ref[...] += jnp.dot(x_ref[...], w_ref[...],
                          preferred_element_type=jnp.float32)


def _mm_kernel_scratch_acc(x_ref, w_ref, o_ref, acc_ref):
    """Non-f32 output: f32 scratch accumulator, cast on the last k step."""

    @pl.when(pl.program_id(2) == 0)
    def _init():
        acc_ref[...] = jnp.zeros_like(acc_ref)

    acc_ref[...] += jnp.dot(x_ref[...], w_ref[...],
                            preferred_element_type=jnp.float32)

    @pl.when(pl.program_id(2) == pl.num_programs(2) - 1)
    def _finalize():
        o_ref[...] = acc_ref[...].astype(o_ref.dtype)


def _pick_col_tile(Fp, preferred):
    """Largest multiple of 128 that divides Fp and is <= preferred."""
    preferred = max(128, min(preferred, Fp))
    preferred -= preferred % 128
    for t in range(preferred, 127, -128):
        if Fp % t == 0:
            return t
    return 128


def _pick_row_tile(m_rs, tn, tk, in_itemsize, out_itemsize, sublane, grid_n,
                   budget_bytes, num_tc, use_scratch_acc, w_buffers):
    """VMEM-budgeted row tile and row-grid size (megacore-balanced on 2-TC chips)."""

    def footprint(tm):
        fp = (2 * tm * tk * in_itemsize            # x block, double-buffered
              + w_buffers * tk * tn * in_itemsize  # w block, 2-3 buffers
              + 2 * tm * tn * out_itemsize)        # out block, double-buffered
        if use_scratch_acc:
            fp += tm * tn * 4                      # f32 accumulator scratch
        return fp

    tm = _round_up(min(2048, m_rs), sublane)
    while tm > sublane and footprint(tm) > budget_bytes:
        tm -= sublane

    grid_m = _cdiv(m_rs, tm)
    # Balance tile sizes across the row grid.
    tm = _round_up(_cdiv(m_rs, grid_m), sublane)
    grid_m = _cdiv(m_rs, tm)

    # Megacore chips only: keep the parallel step count even (and >= 2) so both
    # TensorCores get equal work.  Footprint can only shrink here.
    if num_tc >= 2 and (grid_m * grid_n) % 2 != 0 and m_rs >= (grid_m + 1) * sublane:
        grid_m += 1
        tm = _round_up(_cdiv(m_rs, grid_m), sublane)

    return tm, grid_m


def linear_full(features, transformation_matrix, *, compute_dtype=None,
                force_pallas=False):
    """features: (..., F) ; transformation_matrix: (F, F) -> (..., F)."""
    *lead, F = features.shape
    assert transformation_matrix.shape == (F, F)
    out_dtype = jnp.dtype(features.dtype)

    x2d = features.reshape(-1, F)
    M = x2d.shape[0]

    w = transformation_matrix
    if compute_dtype is not None:
        x2d = x2d.astype(compute_dtype)
        w = w.astype(compute_dtype)
    in_dtype = jnp.dtype(x2d.dtype)

    # Small-problem fast path: launch + pad/slice + per-step overhead beats any
    # kernel win at this size.
    if not force_pallas and 2 * M * F * F < int(1e7):
        out = jnp.dot(x2d, w, preferred_element_type=jnp.float32).astype(out_dtype)
        return out.reshape(*lead, F)

    in_itemsize = in_dtype.itemsize
    out_itemsize = out_dtype.itemsize
    sublane = max(8, 32 // in_itemsize)  # 8 for f32, 16 for bf16

    vmem_limit, vmem_budget, num_tc = _tpu_info()

    # Lane-dense feature axis: pad K/N up to a multiple of 128 (zero-pad is exact).
    Fp = _round_up(F, 128)
    tn = _pick_col_tile(Fp, 512)
    tk = _pick_col_tile(Fp, 512)
    grid_n = Fp // tn
    grid_k = Fp // tk

    use_scratch_acc = out_dtype != jnp.dtype(jnp.float32)

    # Small-M / large-F is W-streaming bound: deepen W pipelining to 3 buffers.
    m_rs = _round_up(M, sublane)
    w_buffers = 3 if (m_rs <= 256 and grid_k >= 3) else 2

    tm, grid_m = _pick_row_tile(m_rs, tn, tk, in_itemsize, out_itemsize, sublane,
                                grid_n, vmem_budget, num_tc, use_scratch_acc,
                                w_buffers)
    Mp = grid_m * tm

    padded = False
    x = x2d
    if (Mp, Fp) != (M, F):
        x = jnp.pad(x2d, ((0, Mp - M), (0, Fp - F)))
        padded = True
    if Fp != F:
        w = jnp.pad(w, ((0, Fp - F), (0, Fp - F)))
        padded = True

    cost = pl.CostEstimate(
        flops=2 * Mp * Fp * Fp,
        transcendentals=0,
        bytes_accessed=(grid_n * Mp * Fp * in_itemsize     # x re-read per n tile
                        + grid_m * Fp * Fp * in_itemsize   # W re-read per m tile
                        + Mp * Fp * out_itemsize),
    )

    if w_buffers == 2:
        w_spec = pl.BlockSpec((tk, tn), lambda i, j, k: (k, j))
    else:
        w_spec = pl.BlockSpec((tk, tn), lambda i, j, k: (k, j),
                              pipeline_mode=pl.Buffered(w_buffers))

    if use_scratch_acc:
        kernel = _mm_kernel_scratch_acc
        scratch_shapes = [pltpu.VMEM((tm, tn), jnp.float32)]
    else:
        kernel = _mm_kernel_accumulate_out
        scratch_shapes = []

    out = pl.pallas_call(
        kernel,
        out_shape=jax.ShapeDtypeStruct((Mp, Fp), out_dtype),
        grid_spec=pltpu.PrefetchScalarGridSpec(
            num_scalar_prefetch=0,
            grid=(grid_m, grid_n, grid_k),
            in_specs=[
                pl.BlockSpec((tm, tk), lambda i, j, k: (i, k)),  # features tile
                w_spec,                                           # weight tile
            ],
            out_specs=pl.BlockSpec((tm, tn), lambda i, j, k: (i, j)),
            scratch_shapes=scratch_shapes,
        ),
        compiler_params=pltpu.CompilerParams(
            dimension_semantics=("parallel", "parallel", "arbitrary"),
            vmem_limit_bytes=vmem_limit,
            allow_input_fusion=[True, True] if padded else None,
        ),
        cost_estimate=cost,
    )(x, w)

    if Fp != F:
        out = out[:M, :F]
    elif Mp != M:
        out = out[:M]
    return out.reshape(*lead, F)


if __name__ == "__main__":
    key = jax.random.PRNGKey(0)
    k_feat, k_w, k_feat2, k_w2 = jax.random.split(key, 4)

    # --- Small demo matching the PyTorch module defaults ---------------------
    batch, n_features, sigma = 8, 32, 0.01
    w_small = jax.random.normal(k_w, (n_features, n_features), jnp.float32) * sigma
    x_small = jax.random.normal(k_feat, (batch, n_features), jnp.float32)
    ref_small = x_small @ w_small

    # Fast path (plain XLA dot for tiny problems).
    out_fast = jax.block_until_ready(linear_full(x_small, w_small))
    assert out_fast.shape == (batch, n_features)
    assert jnp.allclose(out_fast, ref_small, atol=1e-5, rtol=1e-5)

    # Same problem forced through the Pallas kernel (exercises the padded path).
    out_pk = jax.block_until_ready(linear_full(x_small, w_small, force_pallas=True))
    assert out_pk.shape == (batch, n_features)
    assert jnp.allclose(out_pk, ref_small, atol=1e-5, rtol=1e-5)

    # --- Larger / ragged shape exercising the tiled + padded Pallas path -----
    M2, F2 = 300, 200
    w2 = jax.random.normal(k_w2, (F2, F2), jnp.float32) * sigma
    x2 = jax.random.normal(k_feat2, (M2, F2), jnp.float32)

    out2 = jax.block_until_ready(linear_full(x2, w2))
    ref2 = x2 @ w2
    assert out2.shape == (M2, F2)
    assert jnp.allclose(out2, ref2, atol=1e-5, rtol=1e-5)

    # --- bf16 compute path (f32 accumulation) for v5e/v6e/v7x MXU rates ------
    out3 = jax.block_until_ready(linear_full(x2, w2, compute_dtype=jnp.bfloat16))
    ref3 = jnp.dot(x2.astype(jnp.bfloat16), w2.astype(jnp.bfloat16),
                   preferred_element_type=jnp.float32)
    assert out3.shape == (M2, F2)
    assert jnp.allclose(out3, ref3, atol=1e-4, rtol=1e-4)

    print("KERNEL_OK")
</pallas_src>

<mosaic_0001>
module attributes {stable_mosaic.version = 11 : i64} {
  func.func @_mm_kernel_accumulate_out(%arg0: i32, %arg1: i32, %arg2: i32, %arg3: memref<8x128xf32, #tpu.memory_space<vmem>>, %arg4: memref<128x128xf32, #tpu.memory_space<vmem>>, %arg5: memref<8x128xf32, #tpu.memory_space<vmem>>) attributes {dimension_semantics = [#tpu.dimension_semantics<parallel>, #tpu.dimension_semantics<parallel>, #tpu.dimension_semantics<arbitrary>], iteration_bounds = array<i64: 1, 1, 1>, scalar_prefetch = 0 : i64, scratch_operands = 0 : i64, tpu.core_type = #tpu.core_type<tc>, window_params = [{transform_indices = @transform_0, window_bounds = array<i64: 8, 128>}, {transform_indices = @transform_1, window_bounds = array<i64: 128, 128>}, {transform_indices = @transform_2, window_bounds = array<i64: 8, 128>}]} {
    %c0_i32 = arith.constant 0 : i32
    %0 = arith.cmpi eq, %arg2, %c0_i32 : i32
    %1 = arith.extui %0 : i1 to i32
    %c0_i32_0 = arith.constant 0 : i32
    %2 = arith.cmpi ne, %1, %c0_i32_0 : i32
    scf.if %2 {
      %cst_8 = arith.constant 0.000000e+00 : f32
      %9 = vector.broadcast %cst_8 : f32 to vector<8x128xf32>
      %c0_9 = arith.constant 0 : index
      %c0_10 = arith.constant 0 : index
      %10 = vector.load %arg5[%c0_9, %c0_10] : memref<8x128xf32, #tpu.memory_space<vmem>>, vector<8x128xf32>
      tpu.vector_store %arg5[%c0_9, %c0_10], %9 {strides = array<i32>} : memref<8x128xf32, #tpu.memory_space<vmem>>, vector<8x128xf32>,
    } else {
    }
    %c0 = arith.constant 0 : index
    %c0_1 = arith.constant 0 : index
    %3 = vector.load %arg5[%c0, %c0_1] : memref<8x128xf32, #tpu.memory_space<vmem>>, vector<8x128xf32>
    %c0_2 = arith.constant 0 : index
    %c0_3 = arith.constant 0 : index
    %4 = vector.load %arg3[%c0_2, %c0_3] : memref<8x128xf32, #tpu.memory_space<vmem>>, vector<8x128xf32>
    %c0_4 = arith.constant 0 : index
    %c0_5 = arith.constant 0 : index
    %5 = vector.load %arg4[%c0_4, %c0_5] : memref<128x128xf32, #tpu.memory_space<vmem>>, vector<128x128xf32>
    %cst = arith.constant dense<0.000000e+00> : vector<8x128xf32>
    %6 = tpu.matmul %4, %5, %cst {dimension_numbers = #tpu.dot_dimension_numbers<[1], [0], [0], [1], [0, 0, 1, 1], [], []>} : vector<8x128xf32>, vector<128x128xf32>, vector<8x128xf32> -> vector<8x128xf32>
    %7 = arith.addf %3, %6 : vector<8x128xf32>
    %c0_6 = arith.constant 0 : index
    %c0_7 = arith.constant 0 : index
    %8 = vector.load %arg5[%c0_6, %c0_7] : memref<8x128xf32, #tpu.memory_space<vmem>>, vector<8x128xf32>
    tpu.vector_store %arg5[%c0_6, %c0_7], %7 {strides = array<i32>} : memref<8x128xf32, #tpu.memory_space<vmem>>, vector<8x128xf32>,
    return
  }
  func.func @transform_0(%arg0: i32, %arg1: i32, %arg2: i32) -> (i32, i32) {
    %c0_i32 = arith.constant 0 : i32
    return %arg0, %arg2 : i32, i32
  }
  func.func @transform_1(%arg0: i32, %arg1: i32, %arg2: i32) -> (i32, i32) {
    %c0_i32 = arith.constant 0 : i32
    return %arg2, %arg1 : i32, i32
  }
  func.func @transform_2(%arg0: i32, %arg1: i32, %arg2: i32) -> (i32, i32) {
    %c0_i32 = arith.constant 0 : i32
    return %arg0, %arg1 : i32, i32
  }
}

</mosaic_0001>

<llo_original>
// kernel: tpu_custom_call.1
$region0: #{tpu_custom_call.1}
  #allocation0 [shape = 'u32[]', space=smem, size = 0x4, offset = 0x4, fixed_abs, tag = 'smem constant byte address 0x4 - core index']
  #allocation1 [shape = 'u32[144,128]{1,0:T(1,128)}', space=vmem, size = 0x12000, scoped, tag = 'internal scratch']
  %s0 = inlined_call_operand.hbm [shape: f32[8,128], index: 0, kind: input, shape index: {}]
  %s1 = inlined_call_operand.hbm [shape: f32[128,128], index: 1, kind: input, shape index: {}]
  %s2 = inlined_call_operand.hbm [shape: f32[8,128], index: 2, kind: output, shape index: {}]
  %s3 = sld [smem:[#allocation0]]
  $region30: #{tpu_custom_call.1} parent=0
    _
  %s5 = ssub.s32 1, %s3
  %s6 = scalar_select 0, %s5, %s3
  $region1: #{tpu_custom_call.1} parent=0
    #allocation2 [shape = 'u8[4096]{0}', space=vmem, size = 0x1000, scoped, tag = 'input window, operand 0, single buffered']
    #allocation3 [shape = 's32[1]{0}', space=sflag, size = 0x4, scoped, tag = 'scoped memory for tpu_custom_call.1']
    #allocation4 [shape = 's32[1]{0}', space=sflag, size = 0x4, scoped, tag = 'scoped memory for tpu_custom_call.1']
    #allocation5 [shape = 'u8[65536]{0}', space=vmem, size = 0x10000, scoped, tag = 'input window, operand 1, single buffered']
    #allocation6 [shape = 's32[1]{0}', space=sflag, size = 0x4, scoped, tag = 'scoped memory for tpu_custom_call.1']
    #allocation7 [shape = 'u8[4096]{0}', space=vmem, size = 0x1000, scoped, tag = 'output window, operand 0, single buffered']
    %7 = vsyncpa [#allocation3], 0
    %8 = vsyncpa [#allocation6], 0
    %9 = vsyncpa [#allocation4], 0
    // Predicated region
    $region2: #{tpu_custom_call.1} parent=1 // pred_check
      _
    $region3: #{tpu_custom_call.1} parent=1 // pred_check_branch
      %11 = sbr.rel (0) target = $region5
    $region4: #{tpu_custom_call.1} parent=1 // pred_region
      %s13 = ssub.s32 128, 128
      %14 = vsyncadd [#allocation3], %s13
      %s16 = sshll.u32 [#allocation2], 4
      %s17 = int_to_ptr.vmem [resolvable:$true] %s16
      %19 = dma.hbm_to_vmem [thread:$0]  %s0, 128, %s17, [#allocation3]
    $region5: #{tpu_custom_call.1} parent=1 // pred_fallthru
      _
    // Predicated region
    $region6: #{tpu_custom_call.1} parent=1 // pred_check
      _
    $region7: #{tpu_custom_call.1} parent=1 // pred_check_branch
      %21 = sbr.rel (0) target = $region9
    $region8: #{tpu_custom_call.1} parent=1 // pred_region
      %s23 = ssub.s32 2048, 2048
      %24 = vsyncadd [#allocation6], %s23
      %s25 = sshll.u32 [#allocation5], 4
      %s26 = int_to_ptr.vmem [resolvable:$true] %s25
      %31 = dma.hbm_to_vmem [thread:$0]  %s1, 2048, %s26, [#allocation6], 128, 128, 8
    $region9: #{tpu_custom_call.1} parent=1 // pred_fallthru
      _
    // Predicated region
    $region10: #{tpu_custom_call.1} parent=1 // pred_check
      _
    $region11: #{tpu_custom_call.1} parent=1 // pred_check_branch
      %33 = sbr.rel (0) target = $region13
    $region12: #{tpu_custom_call.1} parent=1 // pred_region
      %34 = dma.done [#allocation3], 128
    $region13: #{tpu_custom_call.1} parent=1 // pred_fallthru
      _
    // Predicated region
    $region14: #{tpu_custom_call.1} parent=1 // pred_check
      _
    $region15: #{tpu_custom_call.1} parent=1 // pred_check_branch
      %36 = sbr.rel (0) target = $region17
    $region16: #{tpu_custom_call.1} parent=1 // pred_region
      %37 = dma.done [#allocation6], 2048
    $region17: #{tpu_custom_call.1} parent=1 // pred_fallthru
      _
    %p38 = scmp.eq.s32.totalorder 0, 0
    // Predicated region
    $region18: #{tpu_custom_call.1} parent=1 // pred_check
      %p39 = pneg %p38
    $region19: #{tpu_custom_call.1} parent=1 // pred_check_branch
      %41 = sbr.rel (%p39) target = $region21
    $region20: #{tpu_custom_call.1} parent=1 // pred_region
      %42 = vst [vmem:[#allocation7] sm:$0xff] 0.0
    $region21: #{tpu_custom_call.1} parent=1 // pred_fallthru
      _
    %v43 = vld [vmem:[#allocation7] sm:$0xff]
    %v44 = vld [vmem:[#allocation2] sm:$0xff]
    %v45 = vld [vmem:[#allocation5] sm:$0xff]
    %v46 = vld [vmem:[#allocation5 + $0x8] sm:$0xff]
    %v47 = vld [vmem:[#allocation5 + $0x10] sm:$0xff]
    %v48 = vld [vmem:[#allocation5 + $0x18] sm:$0xff]
    %v49 = vld [vmem:[#allocation5 + $0x20] sm:$0xff]
    %v50 = vld [vmem:[#allocation5 + $0x28] sm:$0xff]
    %v51 = vld [vmem:[#allocation5 + $0x30] sm:$0xff]
    %v52 = vld [vmem:[#allocation5 + $0x38] sm:$0xff]
    %v53 = vld [vmem:[#allocation5 + $0x40] sm:$0xff]
    %v54 = vld [vmem:[#allocation5 + $0x48] sm:$0xff]
    %v55 = vld [vmem:[#allocation5 + $0x50] sm:$0xff]
    %v56 = vld [vmem:[#allocation5 + $0x58] sm:$0xff]
    %v57 = vld [vmem:[#allocation5 + $0x60] sm:$0xff]
    %v58 = vld [vmem:[#allocation5 + $0x68] sm:$0xff]
    %v59 = vld [vmem:[#allocation5 + $0x70] sm:$0xff]
    %v60 = vld [vmem:[#allocation5 + $0x78] sm:$0xff]
    %61 = vmatprep.subr.mxu0 0.0
    %62 = vmatpush1.msra.mxu0 %v60
    %63 = vmatprep.subr.mxu0 0.0
    %64 = vmatpush1.msra.mxu0 %v59
    %65 = vmatprep.subr.mxu0 0.0
    %66 = vmatpush1.msra.mxu0 %v58
    %67 = vmatprep.subr.mxu0 0.0
    %68 = vmatpush1.msra.mxu0 %v57
    %69 = vmatprep.subr.mxu0 0.0
    %70 = vmatpush1.msra.mxu0 %v56
    %71 = vmatprep.subr.mxu0 0.0
    %72 = vmatpush1.msra.mxu0 %v55
    %73 = vmatprep.subr.mxu0 0.0
    %74 = vmatpush1.msra.mxu0 %v54
    %75 = vmatprep.subr.mxu0 0.0
    %76 = vmatpush1.msra.mxu0 %v53
    %77 = vmatprep.subr.mxu0 0.0
    %78 = vmatpush1.msra.mxu0 %v52
    %79 = vmatprep.subr.mxu0 0.0
    %80 = vmatpush1.msra.mxu0 %v51
    %81 = vmatprep.subr.mxu0 0.0
    %82 = vmatpush1.msra.mxu0 %v50
    %83 = vmatprep.subr.mxu0 0.0
    %84 = vmatpush1.msra.mxu0 %v49
    %85 = vmatprep.subr.mxu0 0.0
    %86 = vmatpush1.msra.mxu0 %v48
    %87 = vmatprep.subr.mxu0 0.0
    %88 = vmatpush1.msra.mxu0 %v47
    %89 = vmatprep.subr.mxu0 0.0
    %90 = vmatpush1.msra.mxu0 %v46
    %91 = vmatprep.subr.mxu0 0.0
    %92 = vmatpush1.msra.mxu0 %v45
    %93 = vmatprep.subr.mxu0 0.0
    %94 = vmatpush2.msra.mxu0 0.0
    %95 = vmatprep.subr.mxu0 0.0
    %96 = vmatpush2.msra.mxu0 0.0
    %97 = vmatprep.subr.mxu0 0.0
    %98 = vmatpush2.msra.mxu0 0.0
    %99 = vmatprep.subr.mxu0 0.0
    %100 = vmatpush2.msra.mxu0 0.0
    %101 = vmatprep.subr.mxu0 0.0
    %102 = vmatpush2.msra.mxu0 0.0
    %103 = vmatprep.subr.mxu0 0.0
    %104 = vmatpush2.msra.mxu0 0.0
    %105 = vmatprep.subr.mxu0 0.0
    %106 = vmatpush2.msra.mxu0 0.0
    %107 = vmatprep.subr.mxu0 0.0
    %108 = vmatpush2.msra.mxu0 0.0
    %109 = vmatprep.subr.mxu0 0.0
    %110 = vmatpush2.msra.mxu0 0.0
    %111 = vmatprep.subr.mxu0 0.0
    %112 = vmatpush2.msra.mxu0 0.0
    %113 = vmatprep.subr.mxu0 0.0
    %114 = vmatpush2.msra.mxu0 0.0
    %115 = vmatprep.subr.mxu0 0.0
    %116 = vmatpush2.msra.mxu0 0.0
    %117 = vmatprep.subr.mxu0 0.0
    %118 = vmatpush2.msra.mxu0 0.0
    %119 = vmatprep.subr.mxu0 0.0
    %120 = vmatpush2.msra.mxu0 0.0
    %121 = vmatprep.subr.mxu0 0.0
    %122 = vmatpush2.msra.mxu0 0.0
    %123 = vmatprep.subr.mxu0 0.0
    %124 = vmatpush2.msra.mxu0 0.0
    %125 = vmatprep.mubr.f32.mxu0 0.0
    %126 = vmatmul.mubr.f32.gmra.mxu0 %v44
    %v127 = vpop.f32.mrf.mxu0
    %v128 = vadd.f32 0.0, %v127
    %v129 = vpop.f32.mrf.mxu0
    %130 = vdwg.mxu0
    %v131 = vadd.f32 %v43, %v128
    %132 = vst [vmem:[#allocation7] sm:$0xff] %v131
    // Predicated region
    $region22: #{tpu_custom_call.1} parent=1 // pred_check
      _
    $region23: #{tpu_custom_call.1} parent=1 // pred_check_branch
      %134 = sbr.rel (0) target = $region25
    $region24: #{tpu_custom_call.1} parent=1 // pred_region
      %s136 = ssub.s32 128, 128
      %137 = vsyncadd [#allocation4], %s136
      %s139 = sshll.u32 [#allocation7], 4
      %s140 = int_to_ptr.vmem [resolvable:$true] %s139
      %142 = dma.vmem_to_hbm [thread:$0]  %s140, 128, %s2, [#allocation4]
    $region25: #{tpu_custom_call.1} parent=1 // pred_fallthru
      _
    // Predicated region
    $region26: #{tpu_custom_call.1} parent=1 // pred_check
      _
    $region27: #{tpu_custom_call.1} parent=1 // pred_check_branch
      %144 = sbr.rel (0) target = $region29
    $region28: #{tpu_custom_call.1} parent=1 // pred_region
      %145 = dma.done [#allocation4], 128
    $region29: #{tpu_custom_call.1} parent=1 // pred_fallthru
      _
    %146 = vsyncpa [#allocation3], 1
    %147 = vsyncpa [#allocation6], 1
    %148 = vsyncpa [#allocation4], 1

</llo_original>
